<compile_context>
chip_gen: v6e
topology: v6e:2x2x1
jax: 0.10.0
libtpu: 0.0.40
codegen_flags: <defaults>
</compile_context>

<pallas_src>
import functools

import jax
import jax.numpy as jnp
from jax import lax
from jax.experimental import pallas as pl
from jax.experimental.pallas import tpu as pltpu

_LANE = 128


def _round_up(x, m):
    return ((x + m - 1) // m) * m


def _var_sum_kernel(x_ref, out_ref, mean_sc, *, batch, feat, tile_b, tile_d):
    """One (feature-tile, batch-tile) grid step.

    out_ref block: (1, tile_d) f32, resident across the batch axis; it carries
    the running per-column M2 and is scaled to the unbiased variance on the
    last batch step.  mean_sc carries the running per-column mean.
    """
    dj = pl.program_id(0)  # feature tile (parallel across TensorCores)
    bi = pl.program_id(1)  # batch tile (innermost reduction axis)

    @pl.when(bi == 0)
    def _():
        mean_sc[...] = jnp.zeros_like(mean_sc)
        out_ref[...] = jnp.zeros_like(out_ref)

    # In-kernel upcast: HBM streams the native dtype, VPU casts for free.
    x = x_ref[...].astype(jnp.float32)  # (tile_b, tile_d)

    rows_ragged = (batch % tile_b) != 0
    cols_ragged = (feat % tile_d) != 0

    if rows_ragged:
        rows_valid = jnp.minimum(batch - bi * tile_b, tile_b)  # traced scalar
    else:
        rows_valid = tile_b  # static

    row_ids = None
    if rows_ragged or cols_ragged:
        mask = None
        if rows_ragged:
            row_ids = lax.broadcasted_iota(jnp.int32, (tile_b, tile_d), 0)
            mask = row_ids < rows_valid
        if cols_ragged:
            col_ids = lax.broadcasted_iota(jnp.int32, (tile_b, tile_d), 1)
            cmask = col_ids < (feat - dj * tile_d)
            mask = cmask if mask is None else (mask & cmask)
        x = jnp.where(mask, x, 0.0)

    # Per-chunk two-pass statistics (chunk mean + chunk M2).
    n_b = jnp.asarray(rows_valid, dtype=jnp.float32)
    mean_b = jnp.sum(x, axis=0, keepdims=True) / n_b  # (1, tile_d)
    dev = x - mean_b
    if rows_ragged:
        dev = jnp.where(row_ids < rows_valid, dev, 0.0)
    m2_b = jnp.sum(dev * dev, axis=0, keepdims=True)  # (1, tile_d)

    # Chan combine with the running per-column (mean, M2) state.
    n_a = jnp.asarray(bi * tile_b, dtype=jnp.float32)
    n_ab = n_a + n_b
    delta = mean_b - mean_sc[...]
    mean_sc[...] = mean_sc[...] + delta * (n_b / n_ab)
    out_ref[...] = out_ref[...] + m2_b + delta * delta * (n_a * n_b / n_ab)

    # Finalize this feature tile: unbiased variance per column.
    @pl.when(bi == pl.num_programs(1) - 1)
    def _():
        inv_nm1 = (1.0 / (batch - 1)) if batch > 1 else float("nan")
        out_ref[...] = out_ref[...] * inv_nm1


def _pick_tiles(batch, feat, itemsize, target_block_bytes, vmem_budget_bytes,
                max_tile_b):
    # Sublane alignment (packed dtypes pack along sublanes).
    row_align = 8 * max(1, 4 // itemsize)
    if batch <= max_tile_b:
        tile_b = batch  # full batch dim is always a legal block extent
    else:
        tile_b = max(row_align, (max_tile_b // row_align) * row_align)

    d_cap = _round_up(feat, _LANE)
    tile_d = (target_block_bytes // max(1, tile_b * itemsize)) // _LANE * _LANE
    tile_d = max(_LANE, tile_d)
    # Keep the double-buffered input blocks inside the VMEM budget.
    max_tile_d = (vmem_budget_bytes // max(1, 2 * tile_b * itemsize)) // _LANE * _LANE
    tile_d = min(tile_d, max(_LANE, max_tile_d), d_cap)
    return tile_b, tile_d


def variational_loss(output, *, target_block_bytes=4 * 1024 * 1024,
                     vmem_budget_bytes=24 * 1024 * 1024, max_tile_b=1024):
    """sum(var(output, dim=0, unbiased=True)) for output of shape (B, ...)."""
    x = output.reshape(output.shape[0], -1)  # flatten features, keep dtype
    batch, feat = x.shape
    itemsize = x.dtype.itemsize

    tile_b, tile_d = _pick_tiles(batch, feat, itemsize, target_block_bytes,
                                 vmem_budget_bytes, max_tile_b)

    num_d = pl.cdiv(feat, tile_d)
    num_b = pl.cdiv(batch, tile_b)
    d_cap = num_d * tile_d

    kernel = functools.partial(_var_sum_kernel, batch=batch, feat=feat,
                               tile_b=tile_b, tile_d=tile_d)

    # VMEM: input double-buffer + output double-buffer + mean scratch.
    vmem_need = (2 * tile_b * tile_d * itemsize + 2 * tile_d * 4 + tile_d * 4)
    vmem_limit = int(min(max(vmem_need + (8 << 20), 32 << 20), 48 << 20))

    per_col_var = pl.pallas_call(
        kernel,
        out_shape=jax.ShapeDtypeStruct((1, d_cap), jnp.float32),
        grid_spec=pltpu.PrefetchScalarGridSpec(
            num_scalar_prefetch=0,
            grid=(num_d, num_b),
            in_specs=[pl.BlockSpec((tile_b, tile_d), lambda dj, bi: (bi, dj))],
            # Lane-dense per-column variance; resident across the batch axis.
            out_specs=pl.BlockSpec((1, tile_d), lambda dj, bi: (0, dj)),
            scratch_shapes=[pltpu.VMEM((1, tile_d), jnp.float32)],
        ),
        compiler_params=pltpu.CompilerParams(
            dimension_semantics=("parallel", "arbitrary"),
            vmem_limit_bytes=vmem_limit),
    )(x)

    # Padded columns were masked to zero -> zero variance; tiny XLA reduction.
    return jnp.sum(per_col_var)


def variational_loss_ref(output):
    x = output.reshape(output.shape[0], -1).astype(jnp.float32)
    return jnp.sum(jnp.var(x, axis=0, ddof=1))


if __name__ == "__main__":
    key = jax.random.PRNGKey(0)
    k1, k2, k3 = jax.random.split(key, 3)

    # 1) f32, ragged feature tile (D % 128 != 0), single batch tile.
    x1 = jax.random.normal(k1, (8, 200), jnp.float32)
    out1 = jax.block_until_ready(variational_loss(x1))
    ref1 = variational_loss_ref(x1)
    assert out1.shape == ()
    assert jnp.abs(out1 - ref1) < 1e-4 * jnp.maximum(1.0, jnp.abs(ref1))

    # 2) bf16 input -> exercises the in-kernel upcast (native-dtype HBM stream).
    x2 = jax.random.normal(k2, (8, 384), jnp.float32).astype(jnp.bfloat16)
    out2 = jax.block_until_ready(variational_loss(x2))
    ref2 = variational_loss_ref(x2)
    assert jnp.abs(out2 - ref2) < 1e-3 * jnp.maximum(1.0, jnp.abs(ref2))

    # 3) Multi feature tile + batch tiling (Chan combine) + ragged batch tile,
    #    with tiny tiles forced so the full grid is exercised at small shapes.
    #    Large mean checks numerical robustness of the chunked combine.
    x3 = 100.0 + jax.random.normal(k3, (20, 700), jnp.float32)
    out3 = jax.block_until_ready(
        variational_loss(x3, target_block_bytes=8192, max_tile_b=8))
    ref3 = variational_loss_ref(x3)
    assert jnp.abs(out3 - ref3) < 1e-3 * jnp.maximum(1.0, jnp.abs(ref3))

    print("KERNEL_OK")
</pallas_src>

<mosaic_0001>
module attributes {stable_mosaic.version = 11 : i64} {
  func.func @_var_sum_kernel(%arg0: i32, %arg1: i32, %arg2: memref<8x256xf32, #tpu.memory_space<vmem>>, %arg3: memref<1x256xf32, #tpu.memory_space<vmem>>, %arg4: memref<1x256xf32, #tpu.memory_space<vmem>>) attributes {dimension_semantics = [#tpu.dimension_semantics<parallel>, #tpu.dimension_semantics<arbitrary>], iteration_bounds = array<i64: 1, 1>, scalar_prefetch = 0 : i64, scratch_operands = 1 : i64, tpu.core_type = #tpu.core_type<tc>, window_params = [{transform_indices = @transform_0, window_bounds = array<i64: 8, 256>}, {transform_indices = @transform_1, window_bounds = array<i64: 1, 256>}]} {
    %c0_i32 = arith.constant 0 : i32
    %0 = arith.cmpi eq, %arg1, %c0_i32 : i32
    %1 = arith.extui %0 : i1 to i32
    %c0_i32_0 = arith.constant 0 : i32
    %2 = arith.cmpi ne, %1, %c0_i32_0 : i32
    scf.if %2 {
      %cst_20 = arith.constant 0.000000e+00 : f32
      %43 = vector.broadcast %cst_20 : f32 to vector<1x256xf32>
      %c0_21 = arith.constant 0 : index
      %c0_22 = arith.constant 0 : index
      %44 = vector.load %arg4[%c0_21, %c0_22] : memref<1x256xf32, #tpu.memory_space<vmem>>, vector<1x256xf32>
      tpu.vector_store %arg4[%c0_21, %c0_22], %43 {strides = array<i32>} : memref<1x256xf32, #tpu.memory_space<vmem>>, vector<1x256xf32>,
      %cst_23 = arith.constant 0.000000e+00 : f32
      %45 = vector.broadcast %cst_23 : f32 to vector<1x256xf32>
      %c0_24 = arith.constant 0 : index
      %c0_25 = arith.constant 0 : index
      %46 = vector.load %arg3[%c0_24, %c0_25] : memref<1x256xf32, #tpu.memory_space<vmem>>, vector<1x256xf32>
      tpu.vector_store %arg3[%c0_24, %c0_25], %45 {strides = array<i32>} : memref<1x256xf32, #tpu.memory_space<vmem>>, vector<1x256xf32>,
    } else {
    }
    %c0 = arith.constant 0 : index
    %c0_1 = arith.constant 0 : index
    %3 = vector.load %arg2[%c0, %c0_1] : memref<8x256xf32, #tpu.memory_space<vmem>>, vector<8x256xf32>
    %4 = tpu.iota {dimensions = array<i32: 1>} : vector<8x256xi32>
    %c256_i32 = arith.constant 256 : i32
    %5 = arith.muli %arg0, %c256_i32 : i32
    %c200_i32 = arith.constant 200 : i32
    %6 = arith.subi %c200_i32, %5 : i32
    %7 = vector.broadcast %6 : i32 to vector<8x256xi32>
    %8 = arith.cmpi slt, %4, %7 : vector<8x256xi32>
    %cst = arith.constant 0.000000e+00 : f32
    %9 = vector.broadcast %cst : f32 to vector<8x256xf32>
    %10 = arith.select %8, %3, %9 : vector<8x256xi1>, vector<8x256xf32>
    %cst_2 = arith.constant dense<0.000000e+00> : vector<256xf32>
    %11 = vector.multi_reduction <add>, %10, %cst_2 [0] : vector<8x256xf32> to vector<256xf32>
    %12 = vector.shape_cast %11 : vector<256xf32> to vector<1x256xf32>
    %cst_3 = arith.constant 8.000000e+00 : f32
    %13 = vector.broadcast %cst_3 : f32 to vector<1x256xf32>
    %14 = arith.divf %12, %13 : vector<1x256xf32>
    %15 = vector.broadcast %14 : vector<1x256xf32> to vector<8x256xf32>
    %16 = arith.subf %10, %15 : vector<8x256xf32>
    %17 = arith.mulf %16, %16 : vector<8x256xf32>
    %cst_4 = arith.constant dense<0.000000e+00> : vector<256xf32>
    %18 = vector.multi_reduction <add>, %17, %cst_4 [0] : vector<8x256xf32> to vector<256xf32>
    %19 = vector.shape_cast %18 : vector<256xf32> to vector<1x256xf32>
    %c8_i32 = arith.constant 8 : i32
    %20 = arith.muli %arg1, %c8_i32 : i32
    %21 = arith.sitofp %20 : i32 to f32
    %cst_5 = arith.constant 8.000000e+00 : f32
    %22 = arith.addf %21, %cst_5 : f32
    %c0_6 = arith.constant 0 : index
    %c0_7 = arith.constant 0 : index
    %23 = vector.load %arg4[%c0_6, %c0_7] : memref<1x256xf32, #tpu.memory_space<vmem>>, vector<1x256xf32>
    %24 = arith.subf %14, %23 : vector<1x256xf32>
    %c0_8 = arith.constant 0 : index
    %c0_9 = arith.constant 0 : index
    %25 = vector.load %arg4[%c0_8, %c0_9] : memref<1x256xf32, #tpu.memory_space<vmem>>, vector<1x256xf32>
    %cst_10 = arith.constant 8.000000e+00 : f32
    %26 = arith.divf %cst_10, %22 : f32
    %27 = vector.broadcast %26 : f32 to vector<1x256xf32>
    %28 = arith.mulf %24, %27 : vector<1x256xf32>
    %29 = arith.addf %25, %28 : vector<1x256xf32>
    %c0_11 = arith.constant 0 : index
    %c0_12 = arith.constant 0 : index
    %30 = vector.load %arg4[%c0_11, %c0_12] : memref<1x256xf32, #tpu.memory_space<vmem>>, vector<1x256xf32>
    tpu.vector_store %arg4[%c0_11, %c0_12], %29 {strides = array<i32>} : memref<1x256xf32, #tpu.memory_space<vmem>>, vector<1x256xf32>,
    %c0_13 = arith.constant 0 : index
    %c0_14 = arith.constant 0 : index
    %31 = vector.load %arg3[%c0_13, %c0_14] : memref<1x256xf32, #tpu.memory_space<vmem>>, vector<1x256xf32>
    %32 = arith.addf %31, %19 : vector<1x256xf32>
    %33 = arith.mulf %24, %24 : vector<1x256xf32>
    %cst_15 = arith.constant 8.000000e+00 : f32
    %34 = arith.mulf %21, %cst_15 : f32
    %35 = arith.divf %34, %22 : f32
    %36 = vector.broadcast %35 : f32 to vector<1x256xf32>
    %37 = arith.mulf %33, %36 : vector<1x256xf32>
    %38 = arith.addf %32, %37 : vector<1x256xf32>
    %c0_16 = arith.constant 0 : index
    %c0_17 = arith.constant 0 : index
    %39 = vector.load %arg3[%c0_16, %c0_17] : memref<1x256xf32, #tpu.memory_space<vmem>>, vector<1x256xf32>
    tpu.vector_store %arg3[%c0_16, %c0_17], %38 {strides = array<i32>} : memref<1x256xf32, #tpu.memory_space<vmem>>, vector<1x256xf32>,
    %c0_i32_18 = arith.constant 0 : i32
    %40 = arith.cmpi eq, %arg1, %c0_i32_18 : i32
    %41 = arith.extui %40 : i1 to i32
    %c0_i32_19 = arith.constant 0 : i32
    %42 = arith.cmpi ne, %41, %c0_i32_19 : i32
    scf.if %42 {
      %c0_20 = arith.constant 0 : index
      %c0_21 = arith.constant 0 : index
      %43 = vector.load %arg3[%c0_20, %c0_21] : memref<1x256xf32, #tpu.memory_space<vmem>>, vector<1x256xf32>
      %cst_22 = arith.constant 0.142857149 : f32
      %44 = vector.broadcast %cst_22 : f32 to vector<1x256xf32>
      %45 = arith.mulf %43, %44 : vector<1x256xf32>
      %c0_23 = arith.constant 0 : index
      %c0_24 = arith.constant 0 : index
      %46 = vector.load %arg3[%c0_23, %c0_24] : memref<1x256xf32, #tpu.memory_space<vmem>>, vector<1x256xf32>
      tpu.vector_store %arg3[%c0_23, %c0_24], %45 {strides = array<i32>} : memref<1x256xf32, #tpu.memory_space<vmem>>, vector<1x256xf32>,
    } else {
    }
    return
  }
  func.func @transform_0(%arg0: i32, %arg1: i32) -> (i32, i32) {
    %c0_i32 = arith.constant 0 : i32
    return %arg1, %arg0 : i32, i32
  }
  func.func @transform_1(%arg0: i32, %arg1: i32) -> (i32, i32) {
    %c0_i32 = arith.constant 0 : i32
    %c0_i32_0 = arith.constant 0 : i32
    return %c0_i32, %arg0 : i32, i32
  }
}

</mosaic_0001>

<llo_original>
// kernel: tpu_custom_call.1
$region0: #{tpu_custom_call.1}
  #allocation0 [shape = 'u32[]', space=smem, size = 0x4, offset = 0x4, fixed_abs, tag = 'smem constant byte address 0x4 - core index']
  #allocation1 [shape = 'u32[144,128]{1,0:T(1,128)}', space=vmem, size = 0x12000, scoped, tag = 'internal scratch']
  #allocation2 [shape = 'f32[1,256]{1,0:T(1,128)}', space=vmem, size = 0x400, scoped, tag = 'scratch operand']
  %s0 = inlined_call_operand.hbm [shape: f32[8,200], index: 0, kind: input, shape index: {}]
  %s1 = inlined_call_operand.hbm [shape: f32[1,256], index: 1, kind: output, shape index: {}]
  %s2 = sld [smem:[#allocation0]]
  $region26: #{tpu_custom_call.1} parent=0
    _
  %s4 = ssub.s32 1, %s2
  %s5 = scalar_select 0, %s4, %s2
  $region1: #{tpu_custom_call.1} parent=0
    #allocation3 [shape = 'u8[8192]{0}', space=vmem, size = 0x2000, scoped, tag = 'input window, operand 0, single buffered']
    #allocation4 [shape = 's32[1]{0}', space=sflag, size = 0x4, scoped, tag = 'scoped memory for tpu_custom_call.1']
    #allocation5 [shape = 's32[1]{0}', space=sflag, size = 0x4, scoped, tag = 'scoped memory for tpu_custom_call.1']
    #allocation6 [shape = 'u8[1024]{0}', space=vmem, size = 0x400, scoped, tag = 'output window, operand 0, single buffered']
    %6 = vsyncpa [#allocation4], 0
    %7 = vsyncpa [#allocation5], 0
    // Predicated region
    $region2: #{tpu_custom_call.1} parent=1 // pred_check
      _
    $region3: #{tpu_custom_call.1} parent=1 // pred_check_branch
      %9 = sbr.rel (0) target = $region5
    $region4: #{tpu_custom_call.1} parent=1 // pred_region
      %s11 = ssub.s32 256, 256
      %12 = vsyncadd [#allocation4], %s11
      %s14 = sshll.u32 [#allocation3], 4
      %s15 = int_to_ptr.vmem [resolvable:$true] %s14
      %17 = dma.hbm_to_vmem [thread:$0]  %s0, 256, %s15, [#allocation4]
    $region5: #{tpu_custom_call.1} parent=1 // pred_fallthru
      _
    // Predicated region
    $region6: #{tpu_custom_call.1} parent=1 // pred_check
      _
    $region7: #{tpu_custom_call.1} parent=1 // pred_check_branch
      %19 = sbr.rel (0) target = $region9
    $region8: #{tpu_custom_call.1} parent=1 // pred_region
      %20 = dma.done [#allocation4], 256
    $region9: #{tpu_custom_call.1} parent=1 // pred_fallthru
      _
    %p21 = scmp.eq.s32.totalorder 0, 0
    // Predicated region
    $region10: #{tpu_custom_call.1} parent=1 // pred_check
      %p22 = pneg %p21
    $region11: #{tpu_custom_call.1} parent=1 // pred_check_branch
      %24 = sbr.rel (%p22) target = $region13
    $region12: #{tpu_custom_call.1} parent=1 // pred_region
      %v25 = vlaneseq
      %vm26 = vcmp.ge.s32.totalorder %v25, 0
      %vm27 = vcmp.lt.s32.totalorder %v25, 256
      %vm28 = vmand %vm26, %vm27
      %29 = vst.msk [vmem:[#allocation2] sm:$0x3] %vm28, 0.0
      %30 = vst.msk [vmem:[#allocation6] sm:$0x3] %vm28, 0.0
    $region13: #{tpu_custom_call.1} parent=1 // pred_fallthru
      _
    %v31 = vld [vmem:[#allocation3] sm:$0xff]
    %v32 = vld [vmem:[#allocation3 + $0x8] sm:$0xff]
    %v33 = vlaneseq
    %v34 = vand.u32 %v33, 127
    %v35 = vadd.s32 %v34, 128
    %s36 = smul.u32 0, 256
    %s37 = ssub.s32 200, %s36
    %v38 = vstv %s37
    %vm39 = vcmp.lt.s32.totalorder %v34, %v38
    %vm40 = vcmp.lt.s32.totalorder %v35, %v38
    %v41 = vsel %vm39, %v31, 0.0
    %v42 = vsel %vm40, %v32, 0.0
    %v43 = vrot.slane %v41, 4
    %v44 = vadd.f32 %v41, %v43
    %v45 = vrot.slane %v44, 2
    %v46 = vadd.f32 %v44, %v45
    %v47 = vrot.slane %v46, 1
    %v48 = vadd.f32 %v46, %v47
    %v49 = vrot.slane %v42, 4
    %v50 = vadd.f32 %v42, %v49
    %v51 = vrot.slane %v50, 2
    %v52 = vadd.f32 %v50, %v51
    %v53 = vrot.slane %v52, 1
    %v54 = vadd.f32 %v52, %v53
    %v55 = vrcp.pop 8.0
    %v56 = vmul.f32 %v48, %v55
    %v57 = vmul.f32 %v54, %v55
    %v58 = vsub.f32 %v41, %v56
    %v59 = vsub.f32 %v42, %v57
    %v60 = vmul.f32 %v58, %v58
    %v61 = vmul.f32 %v59, %v59
    %v62 = vrot.slane %v60, 4
    %v63 = vadd.f32 %v60, %v62
    %v64 = vrot.slane %v63, 2
    %v65 = vadd.f32 %v63, %v64
    %v66 = vrot.slane %v65, 1
    %v67 = vadd.f32 %v65, %v66
    %v68 = vrot.slane %v61, 4
    %v69 = vadd.f32 %v61, %v68
    %v70 = vrot.slane %v69, 2
    %v71 = vadd.f32 %v69, %v70
    %v72 = vrot.slane %v71, 1
    %v73 = vadd.f32 %v71, %v72
    %s74 = smul.u32 0, 8
    %s75 = scvt.s32.f32 %s74
    %s76 = sadd.f32 %s75, 8.0
    %v77 = vld [vmem:[#allocation2] sm:$0x3]
    %v79 = vlaneseq
    %v80 = vshrl.u32 %v79, 7
    %v81 = vsub.s32 0, %v80
    %v82 = vrot.slane %v77, %v81
    %v83 = vlaneseq
    %v84 = vshrl.u32 %v83, 7
    %v85 = vsub.s32 1, %v84
    %v86 = vrot.slane %v77, %v85
    %v89 = vsub.f32 %v56, %v82
    %v90 = vsub.f32 %v57, %v86
    %v91 = vstv %s76
    %v92 = vrcp.pop %v91
    %s93 = vtos %v92
    %s94 = smul.f32 8.0, %s93
    %v95 = vstv %s94
    %v96 = vmul.f32 %v89, %v95
    %v97 = vmul.f32 %v90, %v95
    %v100 = vcombine.low %v96, %v97
    %v102 = vunpack.c.l.s4 1966171168
    %v103 = vunpack.c.0.s8 %v102
    %v104 = vlaneseq
    %v105 = vshrl.u32 %v104, 7
    %v106 = vsub.s32 %v103, %v105
    %v107 = vrot.slane %v100, %v106
    %v109 = vunpack.c.l.s4 1966171168
    %v110 = vunpack.c.0.s8 %v109
    %v111 = vlaneseq
    %v112 = vshrl.u32 %v111, 7
    %v113 = vsub.s32 %v110, %v112
    %v114 = vrot.slane %v107, %v113
    %v116 = vadd.f32 %v77, %v114
    %v117 = vlaneseq
    %vm118 = vcmp.ge.s32.totalorder %v117, 0
    %vm119 = vcmp.lt.s32.totalorder %v117, 256
    %vm120 = vmand %vm118, %vm119
    %121 = vst.msk [vmem:[#allocation2] sm:$0x3] %vm120, %v116
    %v122 = vld [vmem:[#allocation6] sm:$0x3]
    %v125 = vcombine.low %v67, %v73
    %v127 = vunpack.c.l.s4 1966171168
    %v128 = vunpack.c.0.s8 %v127
    %v129 = vlaneseq
    %v130 = vshrl.u32 %v129, 7
    %v131 = vsub.s32 %v128, %v130
    %v132 = vrot.slane %v125, %v131
    %v134 = vunpack.c.l.s4 1966171168
    %v135 = vunpack.c.0.s8 %v134
    %v136 = vlaneseq
    %v137 = vshrl.u32 %v136, 7
    %v138 = vsub.s32 %v135, %v137
    %v139 = vrot.slane %v132, %v138
    %v141 = vadd.f32 %v122, %v139
    %v142 = vmul.f32 %v89, %v89
    %v143 = vmul.f32 %v90, %v90
    %s144 = smul.f32 %s75, 8.0
    %v145 = vstv %s76
    %v146 = vrcp.pop %v145
    %s147 = vtos %v146
    %s148 = smul.f32 %s144, %s147
    %v149 = vstv %s148
    %v150 = vmul.f32 %v142, %v149
    %v151 = vmul.f32 %v143, %v149
    %v154 = vcombine.low %v150, %v151
    %v156 = vunpack.c.l.s4 1966171168
    %v157 = vunpack.c.0.s8 %v156
    %v158 = vlaneseq
    %v159 = vshrl.u32 %v158, 7
    %v160 = vsub.s32 %v157, %v159
    %v161 = vrot.slane %v154, %v160
    %v163 = vunpack.c.l.s4 1966171168
    %v164 = vunpack.c.0.s8 %v163
    %v165 = vlaneseq
    %v166 = vshrl.u32 %v165, 7
    %v167 = vsub.s32 %v164, %v166
    %v168 = vrot.slane %v161, %v167
    %v170 = vadd.f32 %v141, %v168
    %171 = vst.msk [vmem:[#allocation6] sm:$0x3] %vm120, %v170
    // Predicated region
    $region14: #{tpu_custom_call.1} parent=1 // pred_check
      %p172 = pneg %p21
    $region15: #{tpu_custom_call.1} parent=1 // pred_check_branch
      %174 = sbr.rel (%p172) target = $region17
    $region16: #{tpu_custom_call.1} parent=1 // pred_region
      %v175 = vld [vmem:[#allocation6] sm:$0x3]
      %v176 = vmul.f32 %v175, 0.14285715
      %177 = vst.msk [vmem:[#allocation6] sm:$0x3] %vm120, %v176
    $region17: #{tpu_custom_call.1} parent=1 // pred_fallthru
      _
    // Predicated region
    $region18: #{tpu_custom_call.1} parent=1 // pred_check
      _
    $region19: #{tpu_custom_call.1} parent=1 // pred_check_branch
      %179 = sbr.rel (0) target = $region21
    $region20: #{tpu_custom_call.1} parent=1 // pred_region
      %s181 = ssub.s32 32, 32
      %182 = vsyncadd [#allocation5], %s181
      %s184 = sshll.u32 [#allocation6], 4
      %s185 = int_to_ptr.vmem [resolvable:$true] %s184
      %187 = dma.vmem_to_hbm [thread:$0]  %s185, 32, %s1, [#allocation5]
    $region21: #{tpu_custom_call.1} parent=1 // pred_fallthru
      _
    // Predicated region
    $region22: #{tpu_custom_call.1} parent=1 // pred_check
      _
    $region23: #{tpu_custom_call.1} parent=1 // pred_check_branch
      %189 = sbr.rel (0) target = $region25
    $region24: #{tpu_custom_call.1} parent=1 // pred_region
      %190 = dma.done [#allocation5], 32
    $region25: #{tpu_custom_call.1} parent=1 // pred_fallthru
      _
    %191 = vsyncpa [#allocation4], 1
    %192 = vsyncpa [#allocation5], 1

</llo_original>
